<compile_context>
chip_gen: v7x
topology: tpu7x:2x2x1
jax: 0.10.0
libtpu: 0.0.40
codegen_flags: <defaults>
</compile_context>

<pallas_src>
import math

import jax
import jax.numpy as jnp
from jax.experimental import pallas as pl
from jax.experimental.pallas import tpu as pltpu


_INV_SQRT2 = 1.0 / math.sqrt(2.0)


def _round_up(n, m):
    return (n + m - 1) // m * m


def _cdiv(a, b):
    return -(-a // b)


def _gelu_exact(h):
    # Matches torch.nn.GELU(approximate='none'); computed in f32.
    return 0.5 * h * (1.0 + jax.lax.erf(h * _INV_SQRT2))


def _vmem_capacity_bytes():
    try:
        return int(pltpu.get_tpu_info().vmem_capacity_bytes)
    except Exception:
        return 64 << 20  # conservative floor (v7x per-TensorCore VMEM)


# ----------------------------- kernels -------------------------------------


def _mlp_fused_kernel(x_ref, w1_ref, b1_ref, w2_ref, b2_ref, o_ref):
    # Fast path: both weight matrices resident in VMEM, 1-D grid over tokens.
    # x_ref: (tm, in)   w1_ref: (in, hid)  b1_ref: (1, hid)
    # w2_ref: (hid, out_p)  b2_ref: (1, out_p)  o_ref: (tm, out_p)
    h = jnp.dot(x_ref[...], w1_ref[...], preferred_element_type=jnp.float32)
    h = _gelu_exact(h + b1_ref[...].astype(jnp.float32))
    y = jnp.dot(h.astype(w2_ref.dtype), w2_ref[...],
                preferred_element_type=jnp.float32)
    o_ref[...] = (y + b2_ref[...].astype(jnp.float32)).astype(o_ref.dtype)


def _mlp_hidden_tiled_kernel(x_ref, w1_ref, b1_ref, w2_ref, b2_ref, o_ref,
                             acc_ref):
    # Fallback path: stream the hidden dimension. grid = (token tiles, k tiles)
    # x_ref: (tm, in)   w1_ref: (in, tk)  b1_ref: (1, tk)
    # w2_ref: (tk, out_p)  b2_ref: (1, out_p)  o_ref: (tm, out_p)
    # acc_ref: (tm, out_p) f32 scratch accumulator
    k = pl.program_id(1)

    @pl.when(k == 0)
    def _():
        acc_ref[...] = jnp.zeros_like(acc_ref)

    h = jnp.dot(x_ref[...], w1_ref[...], preferred_element_type=jnp.float32)
    h = _gelu_exact(h + b1_ref[...].astype(jnp.float32))
    acc_ref[...] += jnp.dot(h.astype(w2_ref.dtype), w2_ref[...],
                            preferred_element_type=jnp.float32)

    @pl.when(k == pl.num_programs(1) - 1)
    def _():
        o_ref[...] = (acc_ref[...]
                      + b2_ref[...].astype(jnp.float32)).astype(o_ref.dtype)


# ----------------------------- wrapper --------------------------------------


def mlp_pallas(x, w1, b1, w2, b2, *, tm=None, tk=None,
               force_hidden_tiled=False, interpret=False):
    """Fused MLP forward: GELU(x @ w1 + b1) @ w2 + b2.

    x: [batch, seq, in_features]; w1: [in, hidden]; w2: [hidden, out].
    """
    batch, seq, in_f = x.shape
    hidden = w1.shape[1]
    out_f = w2.shape[1]
    M = batch * seq

    xb = jnp.dtype(x.dtype).itemsize
    w1b = jnp.dtype(w1.dtype).itemsize
    b1b = jnp.dtype(b1.dtype).itemsize
    w2b = jnp.dtype(w2.dtype).itemsize
    b2b = jnp.dtype(b2.dtype).itemsize

    vmem_cap = _vmem_capacity_bytes()
    vmem_budget = int(0.80 * vmem_cap)  # leave headroom for compiler scratch

    # Lane-dense output: pad out_features to a multiple of 128 so output-tile
    # stores are unmasked vst; sliced off after the call.
    out_p = _round_up(out_f, 128)

    def clamp_tm(target):
        t = min(target, _round_up(M, 8))
        if M > 8:
            # >=2 grid steps so the "parallel" token axis splits across v7x's
            # two TensorCores (no effect on v5e/v6e).
            t = min(t, _round_up(_cdiv(M, 2), 8))
        return max(8, t)

    def fast_bytes(t):
        # single-buffered resident weights/biases + double-buffered x/out
        # tiles + f32 intermediates for one tile.
        return (in_f * hidden * w1b + hidden * b1b
                + hidden * out_p * w2b + out_p * b2b
                + 2 * (t * in_f * xb + t * out_p * xb)
                + t * hidden * 4 + t * out_p * 4)

    def tiled_bytes(t, k):
        return (2 * (t * in_f * xb
                     + in_f * k * w1b + k * b1b
                     + k * out_p * w2b
                     + t * out_p * xb)
                + out_p * b2b
                + t * out_p * 4    # f32 accumulator scratch
                + t * k * 4)       # f32 hidden intermediate

    # ---- choose path and tile sizes ----
    use_fast = False
    tm_v = None
    if not force_hidden_tiled:
        for cand in ([tm] if tm is not None else [512, 256, 128]):
            t = clamp_tm(cand)
            if fast_bytes(t) <= vmem_budget:
                use_fast, tm_v = True, t
                break

    if use_fast:
        hidden_pad = hidden
        tk_v = hidden
        needed = fast_bytes(tm_v)
    else:
        tm_v = clamp_tm(tm if tm is not None else 256)
        hid128 = _round_up(hidden, 128)
        tk_v = None
        for cand in ([tk] if tk is not None else [512, 256, 128]):
            k = min(_round_up(cand, 128), hid128)
            if tiled_bytes(tm_v, k) <= vmem_budget:
                tk_v = k
                break
        if tk_v is None:
            tk_v = min(128, hid128)
        hidden_pad = _round_up(hidden, tk_v)
        needed = tiled_bytes(tm_v, tk_v)

    M_pad = _round_up(M, tm_v)

    # ---- pad operands (zero padding is exact: GELU(0)=0 contributes 0) ----
    x2d = x.reshape(M, in_f)
    if M_pad != M:
        x2d = jnp.pad(x2d, ((0, M_pad - M), (0, 0)))
    w1p = w1 if hidden_pad == hidden else jnp.pad(
        w1, ((0, 0), (0, hidden_pad - hidden)))
    b1p = b1 if hidden_pad == hidden else jnp.pad(b1, (0, hidden_pad - hidden))
    if hidden_pad != hidden or out_p != out_f:
        w2p = jnp.pad(w2, ((0, hidden_pad - hidden), (0, out_p - out_f)))
    else:
        w2p = w2
    b2p = b2 if out_p == out_f else jnp.pad(b2, (0, out_p - out_f))
    b1_2d = b1p.reshape(1, hidden_pad)
    b2_2d = b2p.reshape(1, out_p)

    vmem_limit = int(min(max(int(1.25 * needed), 32 << 20),
                         int(0.875 * vmem_cap)))

    cost = pl.CostEstimate(
        flops=2 * M_pad * (in_f * hidden_pad + hidden_pad * out_p),
        transcendentals=M_pad * hidden_pad,
        bytes_accessed=(x2d.size * xb + w1p.size * w1b + b1_2d.size * b1b
                        + w2p.size * w2b + b2_2d.size * b2b
                        + M_pad * out_p * xb),
    )

    def build(single_buffer_weights):
        # Constant-index_map blocks never change; Buffered(1) halves their
        # VMEM footprint with zero wall-clock cost.
        resident = ({"pipeline_mode": pl.Buffered(1)}
                    if single_buffer_weights else {})
        if use_fast:
            grid = (M_pad // tm_v,)
            in_specs = [
                pl.BlockSpec((tm_v, in_f), lambda i: (i, 0)),
                pl.BlockSpec((in_f, hidden_pad), lambda i: (0, 0), **resident),
                pl.BlockSpec((1, hidden_pad), lambda i: (0, 0), **resident),
                pl.BlockSpec((hidden_pad, out_p), lambda i: (0, 0), **resident),
                pl.BlockSpec((1, out_p), lambda i: (0, 0), **resident),
            ]
            out_specs = pl.BlockSpec((tm_v, out_p), lambda i: (i, 0))
            scratch = []
            kernel = _mlp_fused_kernel
            dim_sem = ("parallel",)
        else:
            grid = (M_pad // tm_v, hidden_pad // tk_v)
            in_specs = [
                pl.BlockSpec((tm_v, in_f), lambda i, k: (i, 0)),
                pl.BlockSpec((in_f, tk_v), lambda i, k: (0, k)),
                pl.BlockSpec((1, tk_v), lambda i, k: (0, k)),
                pl.BlockSpec((tk_v, out_p), lambda i, k: (k, 0)),
                pl.BlockSpec((1, out_p), lambda i, k: (0, 0), **resident),
            ]
            out_specs = pl.BlockSpec((tm_v, out_p), lambda i, k: (i, 0))
            scratch = [pltpu.VMEM((tm_v, out_p), jnp.float32)]
            kernel = _mlp_hidden_tiled_kernel
            dim_sem = ("parallel", "arbitrary")

        return pl.pallas_call(
            kernel,
            out_shape=jax.ShapeDtypeStruct((M_pad, out_p), x.dtype),
            grid_spec=pltpu.PrefetchScalarGridSpec(
                num_scalar_prefetch=0,
                grid=grid,
                in_specs=in_specs,
                out_specs=out_specs,
                scratch_shapes=scratch,
            ),
            compiler_params=pltpu.CompilerParams(
                dimension_semantics=dim_sem,
                vmem_limit_bytes=vmem_limit,
            ),
            cost_estimate=cost,
            interpret=interpret,
        )

    args = (x2d, w1p, b1_2d, w2p, b2_2d)
    try:
        out2d = build(single_buffer_weights=True)(*args)
    except Exception:
        # Safety net: if this jax build rejects pipeline_mode=pl.Buffered(1),
        # retry with default double-buffering (correct, just more VMEM).
        out2d = build(single_buffer_weights=False)(*args)

    out2d = out2d[:M, :out_f]
    return out2d.reshape(batch, seq, out_f)


# ----------------------------- reference / test ------------------------------


def mlp_reference(x, w1, b1, w2, b2):
    h = jnp.einsum("bsi,ih->bsh", x, w1) + b1
    h = 0.5 * h * (1.0 + jax.lax.erf(h / jnp.sqrt(2.0)))
    return jnp.einsum("bsh,ho->bso", h, w2) + b2


def _make_params(key, in_features, hidden_features, out_features):
    k1, k2, k3, k4 = jax.random.split(key, 4)
    lim1 = 1.0 / math.sqrt(in_features)
    lim2 = 1.0 / math.sqrt(hidden_features)
    w1 = jax.random.uniform(k1, (in_features, hidden_features),
                            minval=-lim1, maxval=lim1, dtype=jnp.float32)
    b1 = jax.random.uniform(k2, (hidden_features,),
                            minval=-lim1, maxval=lim1, dtype=jnp.float32)
    w2 = jax.random.uniform(k3, (hidden_features, out_features),
                            minval=-lim2, maxval=lim2, dtype=jnp.float32)
    b2 = jax.random.uniform(k4, (out_features,),
                            minval=-lim2, maxval=lim2, dtype=jnp.float32)
    return w1, b1, w2, b2


if __name__ == "__main__":
    key = jax.random.PRNGKey(0)

    # Case 1: small shapes implied by the module (resident-weight fast path,
    # narrow output -> exercises lane-dense out padding).
    batch, seq = 2, 8
    in_f, hid_f, out_f = 32, 64, 32
    kx, kp = jax.random.split(key)
    x = jax.random.normal(kx, (batch, seq, in_f), dtype=jnp.float32)
    w1, b1, w2, b2 = _make_params(kp, in_f, hid_f, out_f)

    out = jax.block_until_ready(mlp_pallas(x, w1, b1, w2, b2))
    ref = mlp_reference(x, w1, b1, w2, b2)
    assert out.shape == (batch, seq, out_f)
    assert jnp.allclose(out, ref, atol=1e-5, rtol=1e-5), "mismatch (case 1)"

    # Case 2: token count not a multiple of the tile -> exercises M padding.
    batch2, seq2 = 2, 37
    in_f2, hid_f2, out_f2 = 128, 256, 128
    kx2, kp2 = jax.random.split(kp)
    x2 = jax.random.normal(kx2, (batch2, seq2, in_f2), dtype=jnp.float32)
    p2 = _make_params(kp2, in_f2, hid_f2, out_f2)

    out2 = jax.block_until_ready(mlp_pallas(x2, *p2))
    ref2 = mlp_reference(x2, *p2)
    assert out2.shape == (batch2, seq2, out_f2)
    assert jnp.allclose(out2, ref2, atol=1e-4, rtol=1e-4), "mismatch (case 2)"

    # Case 3: force the hidden-streamed fallback kernel (the path used when
    # the weights would exceed VMEM, e.g. large widths on v7x) at a small
    # shape with 2 reduction steps to validate the accumulator path.
    out3 = jax.block_until_ready(
        mlp_pallas(x2, *p2, force_hidden_tiled=True, tk=128))
    assert jnp.allclose(out3, ref2, atol=1e-4, rtol=1e-4), "mismatch (case 3)"

    print("KERNEL_OK")
</pallas_src>

<mosaic_0001>
module attributes {stable_mosaic.version = 11 : i64} {
  func.func @_mlp_fused_kernel(%arg0: i32, %arg1: memref<8x32xf32, #tpu.memory_space<vmem>>, %arg2: memref<32x64xf32, #tpu.memory_space<vmem>>, %arg3: memref<1x64xf32, #tpu.memory_space<vmem>>, %arg4: memref<64x128xf32, #tpu.memory_space<vmem>>, %arg5: memref<1x128xf32, #tpu.memory_space<vmem>>, %arg6: memref<8x128xf32, #tpu.memory_space<vmem>>) attributes {dimension_semantics = [#tpu.dimension_semantics<parallel>], iteration_bounds = array<i64: 2>, scalar_prefetch = 0 : i64, scratch_operands = 0 : i64, tpu.core_type = #tpu.core_type<tc>, window_params = [{transform_indices = @transform_0, window_bounds = array<i64: 8, 32>}, {pipeline_mode = #tpu.pipeline_mode<synchronous>, transform_indices = @transform_1, window_bounds = array<i64: 32, 64>}, {pipeline_mode = #tpu.pipeline_mode<synchronous>, transform_indices = @transform_2, window_bounds = array<i64: 1, 64>}, {pipeline_mode = #tpu.pipeline_mode<synchronous>, transform_indices = @transform_3, window_bounds = array<i64: 64, 128>}, {pipeline_mode = #tpu.pipeline_mode<synchronous>, transform_indices = @transform_4, window_bounds = array<i64: 1, 128>}, {transform_indices = @transform_5, window_bounds = array<i64: 8, 128>}]} {
    %c0 = arith.constant 0 : index
    %c0_0 = arith.constant 0 : index
    %0 = vector.load %arg1[%c0, %c0_0] : memref<8x32xf32, #tpu.memory_space<vmem>>, vector<8x32xf32>
    %c0_1 = arith.constant 0 : index
    %c0_2 = arith.constant 0 : index
    %1 = vector.load %arg2[%c0_1, %c0_2] : memref<32x64xf32, #tpu.memory_space<vmem>>, vector<32x64xf32>
    %cst = arith.constant dense<0.000000e+00> : vector<8x64xf32>
    %2 = tpu.matmul %0, %1, %cst {dimension_numbers = #tpu.dot_dimension_numbers<[1], [0], [0], [1], [0, 0, 1, 1], [], []>} : vector<8x32xf32>, vector<32x64xf32>, vector<8x64xf32> -> vector<8x64xf32>
    %c0_3 = arith.constant 0 : index
    %c0_4 = arith.constant 0 : index
    %3 = vector.load %arg3[%c0_3, %c0_4] : memref<1x64xf32, #tpu.memory_space<vmem>>, vector<1x64xf32>
    %4 = vector.broadcast %3 : vector<1x64xf32> to vector<8x64xf32>
    %5 = arith.addf %2, %4 : vector<8x64xf32>
    %cst_5 = arith.constant 5.000000e-01 : f32
    %6 = vector.broadcast %cst_5 : f32 to vector<8x64xf32>
    %7 = arith.mulf %6, %5 : vector<8x64xf32>
    %cst_6 = arith.constant 0.707106769 : f32
    %8 = vector.broadcast %cst_6 : f32 to vector<8x64xf32>
    %9 = arith.mulf %5, %8 : vector<8x64xf32>
    %10 = math.erf %9 : vector<8x64xf32>
    %cst_7 = arith.constant 1.000000e+00 : f32
    %11 = vector.broadcast %cst_7 : f32 to vector<8x64xf32>
    %12 = arith.addf %11, %10 : vector<8x64xf32>
    %13 = arith.mulf %7, %12 : vector<8x64xf32>
    %c0_8 = arith.constant 0 : index
    %c0_9 = arith.constant 0 : index
    %14 = vector.load %arg4[%c0_8, %c0_9] : memref<64x128xf32, #tpu.memory_space<vmem>>, vector<64x128xf32>
    %cst_10 = arith.constant dense<0.000000e+00> : vector<8x128xf32>
    %15 = tpu.matmul %13, %14, %cst_10 {dimension_numbers = #tpu.dot_dimension_numbers<[1], [0], [0], [1], [0, 0, 1, 1], [], []>} : vector<8x64xf32>, vector<64x128xf32>, vector<8x128xf32> -> vector<8x128xf32>
    %c0_11 = arith.constant 0 : index
    %c0_12 = arith.constant 0 : index
    %16 = vector.load %arg5[%c0_11, %c0_12] : memref<1x128xf32, #tpu.memory_space<vmem>>, vector<1x128xf32>
    %17 = vector.broadcast %16 : vector<1x128xf32> to vector<8x128xf32>
    %18 = arith.addf %15, %17 : vector<8x128xf32>
    %c0_13 = arith.constant 0 : index
    %c0_14 = arith.constant 0 : index
    %19 = vector.load %arg6[%c0_13, %c0_14] : memref<8x128xf32, #tpu.memory_space<vmem>>, vector<8x128xf32>
    tpu.vector_store %arg6[%c0_13, %c0_14], %18 {strides = array<i32>} : memref<8x128xf32, #tpu.memory_space<vmem>>, vector<8x128xf32>,
    return
  }
  func.func @transform_0(%arg0: i32) -> (i32, i32) {
    %c0_i32 = arith.constant 0 : i32
    %c0_i32_0 = arith.constant 0 : i32
    return %arg0, %c0_i32 : i32, i32
  }
  func.func @transform_1(%arg0: i32) -> (i32, i32) {
    %c0_i32 = arith.constant 0 : i32
    %c0_i32_0 = arith.constant 0 : i32
    %c0_i32_1 = arith.constant 0 : i32
    return %c0_i32, %c0_i32_0 : i32, i32
  }
  func.func @transform_2(%arg0: i32) -> (i32, i32) {
    %c0_i32 = arith.constant 0 : i32
    %c0_i32_0 = arith.constant 0 : i32
    %c0_i32_1 = arith.constant 0 : i32
    return %c0_i32, %c0_i32_0 : i32, i32
  }
  func.func @transform_3(%arg0: i32) -> (i32, i32) {
    %c0_i32 = arith.constant 0 : i32
    %c0_i32_0 = arith.constant 0 : i32
    %c0_i32_1 = arith.constant 0 : i32
    return %c0_i32, %c0_i32_0 : i32, i32
  }
  func.func @transform_4(%arg0: i32) -> (i32, i32) {
    %c0_i32 = arith.constant 0 : i32
    %c0_i32_0 = arith.constant 0 : i32
    %c0_i32_1 = arith.constant 0 : i32
    return %c0_i32, %c0_i32_0 : i32, i32
  }
  func.func @transform_5(%arg0: i32) -> (i32, i32) {
    %c0_i32 = arith.constant 0 : i32
    %c0_i32_0 = arith.constant 0 : i32
    return %arg0, %c0_i32 : i32, i32
  }
}

module attributes {stable_mosaic.version = 11 : i64} {
  func.func @_mlp_fused_kernel(%arg0: i32, %arg1: memref<8x32xf32, #tpu.memory_space<vmem>>, %arg2: memref<32x64xf32, #tpu.memory_space<vmem>>, %arg3: memref<1x64xf32, #tpu.memory_space<vmem>>, %arg4: memref<64x128xf32, #tpu.memory_space<vmem>>, %arg5: memref<1x128xf32, #tpu.memory_space<vmem>>, %arg6: memref<8x128xf32, #tpu.memory_space<vmem>>) attributes {dimension_semantics = [#tpu.dimension_semantics<parallel>], iteration_bounds = array<i64: 2>, scalar_prefetch = 0 : i64, scratch_operands = 0 : i64, tpu.core_type = #tpu.core_type<tc>, window_params = [{transform_indices = @transform_0, window_bounds = array<i64: 8, 32>}, {pipeline_mode = #tpu.pipeline_mode<synchronous>, transform_indices = @transform_1, window_bounds = array<i64: 32, 64>}, {pipeline_mode = #tpu.pipeline_mode<synchronous>, transform_indices = @transform_2, window_bounds = array<i64: 1, 64>}, {pipeline_mode = #tpu.pipeline_mode<synchronous>, transform_indices = @transform_3, window_bounds = array<i64: 64, 128>}, {pipeline_mode = #tpu.pipeline_mode<synchronous>, transform_indices = @transform_4, window_bounds = array<i64: 1, 128>}, {transform_indices = @transform_5, window_bounds = array<i64: 8, 128>}]} {
    %c0 = arith.constant 0 : index
    %c0_0 = arith.constant 0 : index
    %0 = vector.load %arg1[%c0, %c0_0] : memref<8x32xf32, #tpu.memory_space<vmem>>, vector<8x32xf32>
    %c0_1 = arith.constant 0 : index
    %c0_2 = arith.constant 0 : index
    %1 = vector.load %arg2[%c0_1, %c0_2] : memref<32x64xf32, #tpu.memory_space<vmem>>, vector<32x64xf32>
    %cst = arith.constant dense<0.000000e+00> : vector<8x64xf32>
    %2 = tpu.matmul %0, %1, %cst {dimension_numbers = #tpu.dot_dimension_numbers<[1], [0], [0], [1], [0, 0, 1, 1], [], []>} : vector<8x32xf32>, vector<32x64xf32>, vector<8x64xf32> -> vector<8x64xf32>
    %c0_3 = arith.constant 0 : index
    %c0_4 = arith.constant 0 : index
    %3 = vector.load %arg3[%c0_3, %c0_4] : memref<1x64xf32, #tpu.memory_space<vmem>>, vector<1x64xf32>
    %4 = vector.broadcast %3 : vector<1x64xf32> to vector<8x64xf32>
    %5 = arith.addf %2, %4 : vector<8x64xf32>
    %cst_5 = arith.constant 5.000000e-01 : f32
    %6 = vector.broadcast %cst_5 : f32 to vector<8x64xf32>
    %7 = arith.mulf %6, %5 : vector<8x64xf32>
    %cst_6 = arith.constant 0.707106769 : f32
    %8 = vector.broadcast %cst_6 : f32 to vector<8x64xf32>
    %9 = arith.mulf %5, %8 : vector<8x64xf32>
    %10 = math.erf %9 : vector<8x64xf32>
    %cst_7 = arith.constant 1.000000e+00 : f32
    %11 = vector.broadcast %cst_7 : f32 to vector<8x64xf32>
    %12 = arith.addf %11, %10 : vector<8x64xf32>
    %13 = arith.mulf %7, %12 : vector<8x64xf32>
    %c0_8 = arith.constant 0 : index
    %c0_9 = arith.constant 0 : index
    %14 = vector.load %arg4[%c0_8, %c0_9] : memref<64x128xf32, #tpu.memory_space<vmem>>, vector<64x128xf32>
    %cst_10 = arith.constant dense<0.000000e+00> : vector<8x128xf32>
    %15 = tpu.matmul %13, %14, %cst_10 {dimension_numbers = #tpu.dot_dimension_numbers<[1], [0], [0], [1], [0, 0, 1, 1], [], []>} : vector<8x64xf32>, vector<64x128xf32>, vector<8x128xf32> -> vector<8x128xf32>
    %c0_11 = arith.constant 0 : index
    %c0_12 = arith.constant 0 : index
    %16 = vector.load %arg5[%c0_11, %c0_12] : memref<1x128xf32, #tpu.memory_space<vmem>>, vector<1x128xf32>
    %17 = vector.broadcast %16 : vector<1x128xf32> to vector<8x128xf32>
    %18 = arith.addf %15, %17 : vector<8x128xf32>
    %c0_13 = arith.constant 0 : index
    %c0_14 = arith.constant 0 : index
    %19 = vector.load %arg6[%c0_13, %c0_14] : memref<8x128xf32, #tpu.memory_space<vmem>>, vector<8x128xf32>
    tpu.vector_store %arg6[%c0_13, %c0_14], %18 {strides = array<i32>} : memref<8x128xf32, #tpu.memory_space<vmem>>, vector<8x128xf32>,
    return
  }
  func.func @transform_0(%arg0: i32) -> (i32, i32) {
    %c0_i32 = arith.constant 0 : i32
    %c0_i32_0 = arith.constant 0 : i32
    return %arg0, %c0_i32 : i32, i32
  }
  func.func @transform_1(%arg0: i32) -> (i32, i32) {
    %c0_i32 = arith.constant 0 : i32
    %c0_i32_0 = arith.constant 0 : i32
    %c0_i32_1 = arith.constant 0 : i32
    return %c0_i32, %c0_i32_0 : i32, i32
  }
  func.func @transform_2(%arg0: i32) -> (i32, i32) {
    %c0_i32 = arith.constant 0 : i32
    %c0_i32_0 = arith.constant 0 : i32
    %c0_i32_1 = arith.constant 0 : i32
    return %c0_i32, %c0_i32_0 : i32, i32
  }
  func.func @transform_3(%arg0: i32) -> (i32, i32) {
    %c0_i32 = arith.constant 0 : i32
    %c0_i32_0 = arith.constant 0 : i32
    %c0_i32_1 = arith.constant 0 : i32
    return %c0_i32, %c0_i32_0 : i32, i32
  }
  func.func @transform_4(%arg0: i32) -> (i32, i32) {
    %c0_i32 = arith.constant 0 : i32
    %c0_i32_0 = arith.constant 0 : i32
    %c0_i32_1 = arith.constant 0 : i32
    return %c0_i32, %c0_i32_0 : i32, i32
  }
  func.func @transform_5(%arg0: i32) -> (i32, i32) {
    %c0_i32 = arith.constant 0 : i32
    %c0_i32_0 = arith.constant 0 : i32
    return %arg0, %c0_i32 : i32, i32
  }
}

</mosaic_0001>

<llo_original>
// kernel: tpu_custom_call.1
$region0: #{tpu_custom_call.1}
  #allocation0 [shape = 'u32[]', space=smem, size = 0x4, offset = 0x4, fixed_abs, tag = 'smem constant byte address 0x4 - core index']
  #allocation1 [shape = 'u32[144,128]{1,0:T(1,128)}', space=vmem, size = 0x12000, scoped, tag = 'internal scratch']
  %s0 = inlined_call_operand.hbm [shape: f32[16,32], index: 0, kind: input, shape index: {}]
  %s1 = inlined_call_operand.hbm [shape: f32[32,64], index: 1, kind: input, shape index: {}]
  %s2 = inlined_call_operand.vmem [shape: f32[1,64], index: 2, kind: input, shape index: {}]
  %s3 = inlined_call_operand.hbm [shape: f32[64,128], index: 3, kind: input, shape index: {}]
  %s4 = inlined_call_operand.vmem [shape: f32[1,128], index: 4, kind: input, shape index: {}]
  %s5 = inlined_call_operand.hbm [shape: f32[16,128], index: 5, kind: output, shape index: {}]
  %s6 = sld [smem:[#allocation0]]
  $region65: #{tpu_custom_call.1} parent=0
    _
  %s8 = ssub.s32 1, %s6
  %s9 = scalar_select 0, %s8, %s6
  $region1: #{tpu_custom_call.1} parent=0
    #allocation2 [shape = 'u8[8192]{0}', space=vmem, size = 0x2000, scoped, tag = 'input window, operand 0']
    #allocation3 [shape = 's32[2]{0}', space=sflag, size = 0x8, scoped, tag = 'scoped memory for tpu_custom_call.1']
    #allocation4 [shape = 's32[2]{0}', space=sflag, size = 0x8, scoped, tag = 'scoped memory for tpu_custom_call.1']
    #allocation5 [shape = 'u8[16384]{0}', space=vmem, size = 0x4000, scoped, tag = 'input window, operand 1, single buffered']
    #allocation6 [shape = 's32[1]{0}', space=sflag, size = 0x4, scoped, tag = 'scoped memory for tpu_custom_call.1']
    #allocation7 [shape = 'u8[32768]{0}', space=vmem, size = 0x8000, scoped, tag = 'input window, operand 3, single buffered']
    #allocation8 [shape = 'u8[8192]{0}', space=vmem, size = 0x2000, scoped, tag = 'output window, operand 0']
    %10 = vsyncpa [#allocation3], 0
    %s11 = scalar_lea.sflag [#allocation3], 1
    %12 = vsyncpa %s11, 0
    %13 = vsyncpa [#allocation6], 0
    %14 = vsyncpa [#allocation4], 0
    %s15 = scalar_lea.sflag [#allocation4], 1
    %16 = vsyncpa %s15, 0
    loop: start=0, step=1, limit=4
    $region2: #{tpu_custom_call.1} parent=1 // loop_pre_header
      _
    $region3: #{tpu_custom_call.1} parent=1 // loop_header
      %s18 = sphi 0, %s22
      %p19 = scmp.ge.s32.totalorder %s18, 4
      %s28 = sphi 0, %s30
      %s31 = sphi 0, %s28
      %s32 = sphi 0, %s31
      %s48 = sphi 0, %s32
      %s52 = sphi 0, %s52
      %s54 = sphi 0, %s52
      %s55 = sphi 0, %s54
      %s69 = sphi 0, %s55
      %s73 = sphi 0, %s73
      %s75 = sphi 0, %s73
      %s76 = sphi 0, %s75
      %s90 = sphi 0, %s76
      %s94 = sphi 0, %s94
      %s96 = sphi 0, %s94
      %s97 = sphi 0, %s96
      %s111 = sphi 0, %s97
      %s115 = sphi 0, %s115
      %s117 = sphi 0, %s115
      %s118 = sphi 0, %s117
      %s132 = sphi 0, %s118
      %s138 = sphi 0, %s140
      %s141 = sphi 0, %s138
      %s142 = sphi 0, %s141
      %s158 = sphi 0, %s142
    $region4: #{tpu_custom_call.1} parent=1 // loop_header_branch
      %21 = sbr.rel (%p19) target = $region8
    $region5: #{tpu_custom_call.1} parent=1 // loop_body
      %s23 = ssub.s32 %s18, 1
      %s24 = ssub.s32 %s18, 2
      %s25 = sadd.s32 %s18, 1
      %s26 = ssub.s32 %s18, %s25
      %p27 = scmp.eq.s32.totalorder %s26, 0
      %s29 = sadd.s32 %s28, 1
      %s30 = scalar_select %p27, %s28, %s29
      %p33 = pneg %p27
      %p34 = scmp.eq.s32.totalorder %s18, 1
      %p35 = por %p33, %p34
      %p36 = scmp.ne.s32.totalorder %s28, %s31
      %p37 = scmp.eq.s32.totalorder %s18, 0
      %p38 = por %p36, %p37
      %p39 = scmp.ne.s32.totalorder %s28, %s31
      %p40 = scmp.eq.s32.totalorder %s23, 1
      %p41 = por %p39, %p40
      %p42 = scmp.ne.s32.totalorder %s31, %s32
      %p43 = scmp.eq.s32.totalorder %s23, 0
      %p44 = por %p42, %p43
      %p45 = scmp.ne.s32.totalorder %s31, %s32
      %p46 = scmp.eq.s32.totalorder %s24, 1
      %p47 = por %p45, %p46
      %p49 = scmp.ne.s32.totalorder %s32, %s48
      %p50 = scmp.eq.s32.totalorder %s24, 0
      %p51 = por %p49, %p50
      %s53 = sadd.s32 %s52, 1
      %p56 = scmp.eq.s32.totalorder %s18, 1
      %p57 = scmp.ne.s32.totalorder %s52, %s54
      %p58 = scmp.eq.s32.totalorder %s18, 0
      %p59 = por %p57, %p58
      %p60 = scmp.ne.s32.totalorder %s52, %s54
      %p61 = scmp.eq.s32.totalorder %s23, 1
      %p62 = por %p60, %p61
      %p63 = scmp.ne.s32.totalorder %s54, %s55
      %p64 = scmp.eq.s32.totalorder %s23, 0
      %p65 = por %p63, %p64
      %p66 = scmp.ne.s32.totalorder %s54, %s55
      %p67 = scmp.eq.s32.totalorder %s24, 1
      %p68 = por %p66, %p67
      %p70 = scmp.ne.s32.totalorder %s55, %s69
      %p71 = scmp.eq.s32.totalorder %s24, 0
      %p72 = por %p70, %p71
      %s74 = sadd.s32 %s73, 1
      %p77 = scmp.eq.s32.totalorder %s18, 1
      %p78 = scmp.ne.s32.totalorder %s73, %s75
      %p79 = scmp.eq.s32.totalorder %s18, 0
      %p80 = por %p78, %p79
      %p81 = scmp.ne.s32.totalorder %s73, %s75
      %p82 = scmp.eq.s32.totalorder %s23, 1
      %p83 = por %p81, %p82
      %p84 = scmp.ne.s32.totalorder %s75, %s76
      %p85 = scmp.eq.s32.totalorder %s23, 0
      %p86 = por %p84, %p85
      %p87 = scmp.ne.s32.totalorder %s75, %s76
      %p88 = scmp.eq.s32.totalorder %s24, 1
      %p89 = por %p87, %p88
      %p91 = scmp.ne.s32.totalorder %s76, %s90
      %p92 = scmp.eq.s32.totalorder %s24, 0
      %p93 = por %p91, %p92
      %s95 = sadd.s32 %s94, 1
      %p98 = scmp.eq.s32.totalorder %s18, 1
      %p99 = scmp.ne.s32.totalorder %s94, %s96
      %p100 = scmp.eq.s32.totalorder %s18, 0
      %p101 = por %p99, %p100
      %p102 = scmp.ne.s32.totalorder %s94, %s96
      %p103 = scmp.eq.s32.totalorder %s23, 1
      %p104 = por %p102, %p103
      %p105 = scmp.ne.s32.totalorder %s96, %s97
      %p106 = scmp.eq.s32.totalorder %s23, 0
      %p107 = por %p105, %p106
      %p108 = scmp.ne.s32.totalorder %s96, %s97
      %p109 = scmp.eq.s32.totalorder %s24, 1
      %p110 = por %p108, %p109
      %p112 = scmp.ne.s32.totalorder %s97, %s111
      %p113 = scmp.eq.s32.totalorder %s24, 0
      %p114 = por %p112, %p113
      %s116 = sadd.s32 %s115, 1
      %p119 = scmp.eq.s32.totalorder %s18, 1
      %p120 = scmp.ne.s32.totalorder %s115, %s117
      %p121 = scmp.eq.s32.totalorder %s18, 0
      %p122 = por %p120, %p121
      %p123 = scmp.ne.s32.totalorder %s115, %s117
      %p124 = scmp.eq.s32.totalorder %s23, 1
      %p125 = por %p123, %p124
      %p126 = scmp.ne.s32.totalorder %s117, %s118
      %p127 = scmp.eq.s32.totalorder %s23, 0
      %p128 = por %p126, %p127
      %p129 = scmp.ne.s32.totalorder %s117, %s118
      %p130 = scmp.eq.s32.totalorder %s24, 1
      %p131 = por %p129, %p130
      %p133 = scmp.ne.s32.totalorder %s118, %s132
      %p134 = scmp.eq.s32.totalorder %s24, 0
      %p135 = por %p133, %p134
      %s136 = ssub.s32 %s18, %s25
      %p137 = scmp.eq.s32.totalorder %s136, 0
      %s139 = sadd.s32 %s138, 1
      %s140 = scalar_select %p137, %s138, %s139
      %p143 = pneg %p137
      %p144 = scmp.eq.s32.totalorder %s18, 1
      %p145 = por %p143, %p144
      %p146 = scmp.ne.s32.totalorder %s138, %s141
      %p147 = scmp.eq.s32.totalorder %s18, 0
      %p148 = por %p146, %p147
      %p149 = scmp.ne.s32.totalorder %s138, %s141
      %p150 = scmp.eq.s32.totalorder %s23, 1
      %p151 = por %p149, %p150
      %p152 = scmp.ne.s32.totalorder %s141, %s142
      %p153 = scmp.eq.s32.totalorder %s23, 0
      %p154 = por %p152, %p153
      %p155 = scmp.ne.s32.totalorder %s141, %s142
      %p156 = scmp.eq.s32.totalorder %s24, 1
      %p157 = por %p155, %p156
      %p159 = scmp.ne.s32.totalorder %s142, %s158
      %p160 = scmp.eq.s32.totalorder %s24, 0
      %p161 = por %p159, %p160
      %p162 = scmp.le.s32.totalorder 1, %s18
      %p163 = scmp.lt.s32.totalorder %s18, 3
      %p164 = pnand %p162, %p163
      %p165 = pneg %p164
      // Predicated region
      $region9: #{tpu_custom_call.1} parent=5 // pred_check
        _
      $region10: #{tpu_custom_call.1} parent=5 // pred_check_branch
        %167 = sbr.rel (%p164) target = $region12
      $region11: #{tpu_custom_call.1} parent=5 // pred_region
        %s168 = ssub.s32 %s18, 1
        // Predicated region
        $region13: #{tpu_custom_call.1} parent=11 // pred_check
          %p169 = pneg %p65
        $region14: #{tpu_custom_call.1} parent=11 // pred_check_branch
          %171 = sbr.rel (%p169) target = $region16
        $region15: #{tpu_custom_call.1} parent=11 // pred_region
          %s173 = ssub.s32 512, 512
          %174 = vsyncadd [#allocation6], %s173
          %s175 = sshll.u32 [#allocation5], 4
          %s176 = int_to_ptr.vmem [resolvable:$true] %s175
          %181 = dma.hbm_to_vmem [thread:$0]  %s1, 512, %s176, [#allocation6], 128, 128, 8
        $region16: #{tpu_custom_call.1} parent=11 // pred_fallthru
          _
        // Predicated region
        $region17: #{tpu_custom_call.1} parent=11 // pred_check
          %p182 = pneg %p86
        $region18: #{tpu_custom_call.1} parent=11 // pred_check_branch
          %184 = sbr.rel (%p182) target = $region20
        $region19: #{tpu_custom_call.1} parent=11 // pred_region
          _
        $region20: #{tpu_custom_call.1} parent=11 // pred_fallthru
          _
        // Predicated region
        $region21: #{tpu_custom_call.1} parent=11 // pred_check
          %p185 = pneg %p107
        $region22: #{tpu_custom_call.1} parent=11 // pred_check_branch
          %187 = sbr.rel (%p185) target = $region24
        $region23: #{tpu_custom_call.1} parent=11 // pred_region
          %s189 = ssub.s32 1024, 1024
          %190 = vsyncadd [#allocation6], %s189
          %s191 = sshll.u32 [#allocation7], 4
          %s192 = int_to_ptr.vmem [resolvable:$true] %s191
          %197 = dma.hbm_to_vmem [thread:$0]  %s3, 1024, %s192, [#allocation6], 128, 128, 8
        $region24: #{tpu_custom_call.1} parent=11 // pred_fallthru
          _
        // Predicated region
        $region25: #{tpu_custom_call.1} parent=11 // pred_check
          %p198 = pneg %p128
        $region26: #{tpu_custom_call.1} parent=11 // pred_check_branch
          %200 = sbr.rel (%p198) target = $region28
        $region27: #{tpu_custom_call.1} parent=11 // pred_region
          _
        $region28: #{tpu_custom_call.1} parent=11 // pred_fallthru
          _
      $region12: #{tpu_custom_call.1} parent=5 // pred_fallthru
        _
      %p201 = scmp.lt.s32.totalorder %s18, 2
      // Predicated region
      $region29: #{tpu_custom_call.1} parent=5 // pred_check
        %p202 = pneg %p201
      $region30: #{tpu_custom_call.1} parent=5 // pred_check_branch
        %204 = sbr.rel (%p202) target = $region32
      $region31: #{tpu_custom_call.1} parent=5 // pred_region
        // Predicated region
        $region33: #{tpu_custom_call.1} parent=31 // pred_check
          %p205 = pneg %p38
        $region34: #{tpu_custom_call.1} parent=31 // pred_check_branch
          %207 = sbr.rel (%p205) target = $region36
        $region35: #{tpu_custom_call.1} parent=31 // pred_region
          %s208 = sand.u32 %s28, 1
          %s209 = scalar_lea.sflag [#allocation3], %s208
          %s210 = sand.u32 %s28, 1
          %s211 = smul.addr %s210, 8
          %s212 = scalar_lea.vmem [#allocation2], %s211
          %s214 = ssub.s32 128, 128
          %215 = vsyncadd %s209, %s214
          %s216 = smul.addr %s18, 128
          %s217 = scalar_lea.hbm %s0, %s216
          %s219 = sshll.u32 %s212, 4
          %s220 = int_to_ptr.vmem [resolvable:$true] %s219
          %222 = dma.hbm_to_vmem [thread:$0]  %s217, 128, %s220, %s209
        $region36: #{tpu_custom_call.1} parent=31 // pred_fallthru
          _
      $region32: #{tpu_custom_call.1} parent=5 // pred_fallthru
        _
      %p223 = scmp.le.s32.totalorder 1, %s18
      %p224 = scmp.lt.s32.totalorder %s18, 3
      %p225 = pnand %p223, %p224
      %p226 = pneg %p225
      // Predicated region
      $region37: #{tpu_custom_call.1} parent=5 // pred_check
        _
      $region38: #{tpu_custom_call.1} parent=5 // pred_check_branch
        %228 = sbr.rel (%p225) target = $region40
      $region39: #{tpu_custom_call.1} parent=5 // pred_region
        %s229 = ssub.s32 %s18, 1
        %s230 = sand.u32 %s31, 1
        %s231 = scalar_lea.sflag [#allocation3], %s230
        %s232 = sand.u32 %s31, 1
        %s233 = smul.addr %s232, 8
        %s234 = scalar_lea.vmem [#allocation2], %s233
        // Predicated region
        $region41: #{tpu_custom_call.1} parent=39 // pred_check
          %p235 = pneg %p44
        $region42: #{tpu_custom_call.1} parent=39 // pred_check_branch
          %237 = sbr.rel (%p235) target = $region44
        $region43: #{tpu_custom_call.1} parent=39 // pred_region
          %238 = dma.done %s231, 128
        $region44: #{tpu_custom_call.1} parent=39 // pred_fallthru
          _
        // Predicated region
        $region45: #{tpu_custom_call.1} parent=39 // pred_check
          %p239 = pneg %p65
        $region46: #{tpu_custom_call.1} parent=39 // pred_check_branch
          %241 = sbr.rel (%p239) target = $region48
        $region47: #{tpu_custom_call.1} parent=39 // pred_region
          %242 = dma.done [#allocation6], 512
        $region48: #{tpu_custom_call.1} parent=39 // pred_fallthru
          _
        // Predicated region
        $region49: #{tpu_custom_call.1} parent=39 // pred_check
          %p243 = pneg %p107
        $region50: #{tpu_custom_call.1} parent=39 // pred_check_branch
          %245 = sbr.rel (%p243) target = $region52
        $region51: #{tpu_custom_call.1} parent=39 // pred_region
          %246 = dma.done [#allocation6], 1024
        $region52: #{tpu_custom_call.1} parent=39 // pred_fallthru
          _
        %s247 = sand.u32 %s31, 1
        %s248 = scalar_lea.sflag [#allocation3], %s247
        %s249 = sand.u32 %s31, 1
        %s250 = smul.addr %s249, 8
        %s251 = scalar_lea.vmem [#allocation2], %s250
        %p252 = pneg %p44
        %p253 = pneg %p41
        %p254 = pneg %p65
        %p255 = pneg %p62
        %p256 = pneg %p86
        %p257 = pneg %p83
        %p258 = pneg %p107
        %p259 = pneg %p104
        %p260 = pneg %p128
        %p261 = pneg %p125
        %p262 = pneg %p154
        %p263 = pneg %p151
        %s264 = sand.u32 %s141, 1
        %s265 = scalar_lea.sflag [#allocation4], %s264
        %s266 = sand.u32 %s141, 1
        %s267 = smul.addr %s266, 8
        %s268 = scalar_lea.vmem [#allocation8], %s267
        %v269 = vld [vmem:[%s234] sm:$0xff]
        %v270 = vld [vmem:[#allocation5] sm:$0xff]
        %v271 = vld [vmem:[#allocation5 + $0x8] sm:$0xff]
        %v272 = vld [vmem:[#allocation5 + $0x10] sm:$0xff]
        %v273 = vld [vmem:[#allocation5 + $0x18] sm:$0xff]
        %v274 = vld [vmem:[%s2] sm:$0x1]
        %v276 = vlaneseq
        %v277 = vshrl.u32 %v276, 7
        %v278 = vsub.s32 0, %v277
        %v279 = vrot.slane %v274, %v278
        %vm281 = vcmask 261120
        %v283 = vsel %vm281, %v269, 0
        %285 = vmatprep.subr.mxu0 0.0
        %286 = vmatpush1.msra.mxu0 %v270
        %287 = vmatprep.subr.mxu0 0.0
        %288 = vmatpush1.msra.mxu0 %v271
        %289 = vmatprep.subr.mxu0 0.0
        %290 = vmatpush1.msra.mxu0 %v272
        %291 = vmatprep.subr.mxu0 0.0
        %292 = vmatpush1.msra.mxu0 %v273
        %293 = vmatprep.subr.mxu0 0.0
        %294 = vmatpush1.msra.mxu0 0.0
        %295 = vmatprep.subr.mxu0 0.0
        %296 = vmatpush1.msra.mxu0 0.0
        %297 = vmatprep.subr.mxu0 0.0
        %298 = vmatpush1.msra.mxu0 0.0
        %299 = vmatprep.subr.mxu0 0.0
        %300 = vmatpush1.msra.mxu0 0.0
        %301 = vmatprep.subr.mxu0 0.0
        %302 = vmatpush1.msra.mxu0 0.0
        %303 = vmatprep.subr.mxu0 0.0
        %304 = vmatpush1.msra.mxu0 0.0
        %305 = vmatprep.subr.mxu0 0.0
        %306 = vmatpush1.msra.mxu0 0.0
        %307 = vmatprep.subr.mxu0 0.0
        %308 = vmatpush1.msra.mxu0 0.0
        %309 = vmatprep.subr.mxu0 0.0
        %310 = vmatpush1.msra.mxu0 0.0
        %311 = vmatprep.subr.mxu0 0.0
        %312 = vmatpush1.msra.mxu0 0.0
        %313 = vmatprep.subr.mxu0 0.0
        %314 = vmatpush1.msra.mxu0 0.0
        %315 = vmatprep.subr.mxu0 0.0
        %316 = vmatpush1.msra.mxu0 0.0
        %317 = vmatprep.subr.mxu0 0.0
        %318 = vmatpush1.msra.mxu0 0.0
        %319 = vmatprep.subr.mxu0 0.0
        %320 = vmatpush1.msra.mxu0 0.0
        %321 = vmatprep.subr.mxu0 0.0
        %322 = vmatpush1.msra.mxu0 0.0
        %323 = vmatprep.subr.mxu0 0.0
        %324 = vmatpush1.msra.mxu0 0.0
        %325 = vmatprep.subr.mxu0 0.0
        %326 = vmatpush1.msra.mxu0 0.0
        %327 = vmatprep.subr.mxu0 0.0
        %328 = vmatpush1.msra.mxu0 0.0
        %329 = vmatprep.subr.mxu0 0.0
        %330 = vmatpush1.msra.mxu0 0.0
        %331 = vmatprep.subr.mxu0 0.0
        %332 = vmatpush1.msra.mxu0 0.0
        %333 = vmatprep.subr.mxu0 0.0
        %334 = vmatpush1.msra.mxu0 0.0
        %335 = vmatprep.subr.mxu0 0.0
        %336 = vmatpush1.msra.mxu0 0.0
        %337 = vmatprep.subr.mxu0 0.0
        %338 = vmatpush1.msra.mxu0 0.0
        %339 = vmatprep.subr.mxu0 0.0
        %340 = vmatpush1.msra.mxu0 0.0
        %341 = vmatprep.subr.mxu0 0.0
        %342 = vmatpush1.msra.mxu0 0.0
        %343 = vmatprep.subr.mxu0 0.0
        %344 = vmatpush1.msra.mxu0 0.0
        %345 = vmatprep.subr.mxu0 0.0
        %346 = vmatpush1.msra.mxu0 0.0
        %347 = vmatprep.subr.mxu0 0.0
        %348 = vmatpush1.msra.mxu0 0.0
        %349 = vmatprep.mubr.f32.mxu0 0.0
        %350 = vmatmul.mubr.f32.gmra.mrb[0].mxu0 %v283
        %v351 = vpop.f32.mrb[0].mxu0
        %v352 = vadd.f32 %v279, %v351
        %v353 = vpop.f32.mrb[0].mxu0
        %354 = vdwg.mxu0
        %v355 = vmul.f32 %v352, 0.5
        %v356 = vmul.f32 %v352, 0.70710677
        %v357 = verf.f32.pop %v356
        %v358 = vadd.f32 %v357, 1.0
        %v359 = vmul.f32 %v355, %v358
        %v360 = vld [vmem:[#allocation7] sm:$0xff]
        %v361 = vld [vmem:[#allocation7 + $0x8] sm:$0xff]
        %v362 = vld [vmem:[#allocation7 + $0x10] sm:$0xff]
        %v363 = vld [vmem:[#allocation7 + $0x18] sm:$0xff]
        %v364 = vld [vmem:[#allocation7 + $0x20] sm:$0xff]
        %v365 = vld [vmem:[#allocation7 + $0x28] sm:$0xff]
        %v366 = vld [vmem:[#allocation7 + $0x30] sm:$0xff]
        %v367 = vld [vmem:[#allocation7 + $0x38] sm:$0xff]
        %v368 = vld [vmem:[%s4] sm:$0x1]
        %v370 = vlaneseq
        %v371 = vshrl.u32 %v370, 7
        %v372 = vsub.s32 0, %v371
        %v373 = vrot.slane %v368, %v372
        %vm375 = vcmask 523264
        %v377 = vsel %vm375, %v359, 0
        %379 = vmatprep.subr.mxu0 0.0
        %380 = vmatpush1.msra.mxu0 %v360
        %381 = vmatprep.subr.mxu0 0.0
        %382 = vmatpush1.msra.mxu0 %v361
        %383 = vmatprep.subr.mxu0 0.0
        %384 = vmatpush1.msra.mxu0 %v362
        %385 = vmatprep.subr.mxu0 0.0
        %386 = vmatpush1.msra.mxu0 %v363
        %387 = vmatprep.subr.mxu0 0.0
        %388 = vmatpush1.msra.mxu0 %v364
        %389 = vmatprep.subr.mxu0 0.0
        %390 = vmatpush1.msra.mxu0 %v365
        %391 = vmatprep.subr.mxu0 0.0
        %392 = vmatpush1.msra.mxu0 %v366
        %393 = vmatprep.subr.mxu0 0.0
        %394 = vmatpush1.msra.mxu0 %v367
        %395 = vmatprep.subr.mxu0 0.0
        %396 = vmatpush1.msra.mxu0 0.0
        %397 = vmatprep.subr.mxu0 0.0
        %398 = vmatpush1.msra.mxu0 0.0
        %399 = vmatprep.subr.mxu0 0.0
        %400 = vmatpush1.msra.mxu0 0.0
        %401 = vmatprep.subr.mxu0 0.0
        %402 = vmatpush1.msra.mxu0 0.0
        %403 = vmatprep.subr.mxu0 0.0
        %404 = vmatpush1.msra.mxu0 0.0
        %405 = vmatprep.subr.mxu0 0.0
        %406 = vmatpush1.msra.mxu0 0.0
        %407 = vmatprep.subr.mxu0 0.0
        %408 = vmatpush1.msra.mxu0 0.0
        %409 = vmatprep.subr.mxu0 0.0
        %410 = vmatpush1.msra.mxu0 0.0
        %411 = vmatprep.subr.mxu0 0.0
        %412 = vmatpush1.msra.mxu0 0.0
        %413 = vmatprep.subr.mxu0 0.0
        %414 = vmatpush1.msra.mxu0 0.0
        %415 = vmatprep.subr.mxu0 0.0
        %416 = vmatpush1.msra.mxu0 0.0
        %417 = vmatprep.subr.mxu0 0.0
        %418 = vmatpush1.msra.mxu0 0.0
        %419 = vmatprep.subr.mxu0 0.0
        %420 = vmatpush1.msra.mxu0 0.0
        %421 = vmatprep.subr.mxu0 0.0
        %422 = vmatpush1.msra.mxu0 0.0
        %423 = vmatprep.subr.mxu0 0.0
        %424 = vmatpush1.msra.mxu0 0.0
        %425 = vmatprep.subr.mxu0 0.0
        %426 = vmatpush1.msra.mxu0 0.0
        %427 = vmatprep.subr.mxu0 0.0
        %428 = vmatpush1.msra.mxu0 0.0
        %429 = vmatprep.subr.mxu0 0.0
        %430 = vmatpush1.msra.mxu0 0.0
        %431 = vmatprep.subr.mxu0 0.0
        %432 = vmatpush1.msra.mxu0 0.0
        %433 = vmatprep.subr.mxu0 0.0
        %434 = vmatpush1.msra.mxu0 0.0
        %435 = vmatprep.subr.mxu0 0.0
        %436 = vmatpush1.msra.mxu0 0.0
        %437 = vmatprep.subr.mxu0 0.0
        %438 = vmatpush1.msra.mxu0 0.0
        %439 = vmatprep.subr.mxu0 0.0
        %440 = vmatpush1.msra.mxu0 0.0
        %441 = vmatprep.subr.mxu0 0.0
        %442 = vmatpush1.msra.mxu0 0.0
        %443 = vmatprep.mubr.f32.mxu0 0.0
        %444 = vmatmul.mubr.f32.gmra.mrb[0].mxu0 %v377
        %v445 = vpop.f32.mrb[0].mxu0
        %v446 = vadd.f32 %v373, %v445
        %v447 = vpop.f32.mrb[0].mxu0
        %448 = vdwg.mxu0
        %449 = vst [vmem:[%s268] sm:$0xff] %v446
        %s450 = sand.u32 %s141, 1
        %s451 = scalar_lea.sflag [#allocation4], %s450
        %s452 = sand.u32 %s141, 1
        %s453 = smul.addr %s452, 8
        %s454 = scalar_lea.vmem [#allocation8], %s453
        // Predicated region
        $region53: #{tpu_custom_call.1} parent=39 // pred_check
          %p455 = pneg %p151
        $region54: #{tpu_custom_call.1} parent=39 // pred_check_branch
          %457 = sbr.rel (%p455) target = $region56
        $region55: #{tpu_custom_call.1} parent=39 // pred_region
          %s459 = ssub.s32 128, 128
          %460 = vsyncadd %s451, %s459
          %s461 = smul.addr %s23, 128
          %s462 = scalar_lea.hbm %s5, %s461
          %s464 = sshll.u32 %s454, 4
          %s465 = int_to_ptr.vmem [resolvable:$true] %s464
          %467 = dma.vmem_to_hbm [thread:$0]  %s465, 128, %s462, %s451
        $region56: #{tpu_custom_call.1} parent=39 // pred_fallthru
          _
      $region40: #{tpu_custom_call.1} parent=5 // pred_fallthru
        _
      %p468 = scmp.le.s32.totalorder 2, %s18
      // Predicated region
      $region57: #{tpu_custom_call.1} parent=5 // pred_check
        %p469 = pneg %p468
      $region58: #{tpu_custom_call.1} parent=5 // pred_check_branch
        %471 = sbr.rel (%p469) target = $region60
      $region59: #{tpu_custom_call.1} parent=5 // pred_region
        %s472 = ssub.s32 %s18, 2
        // Predicated region
        $region61: #{tpu_custom_call.1} parent=59 // pred_check
          %p473 = pneg %p157
        $region62: #{tpu_custom_call.1} parent=59 // pred_check_branch
          %475 = sbr.rel (%p473) target = $region64
        $region63: #{tpu_custom_call.1} parent=59 // pred_region
          %s476 = sand.u32 %s142, 1
          %s477 = scalar_lea.sflag [#allocation4], %s476
          %s478 = sand.u32 %s142, 1
          %s479 = smul.addr %s478, 8
          %s480 = scalar_lea.vmem [#allocation8], %s479
          %481 = dma.done %s477, 128
        $region64: #{tpu_custom_call.1} parent=59 // pred_fallthru
          _
      $region60: #{tpu_custom_call.1} parent=5 // pred_fallthru
        _
    $region6: #{tpu_custom_call.1} parent=1 // loop_footer
      %s22 = sadd.s32 1, %s18
    $region7: #{tpu_custom_call.1} parent=1 // loop_footer_branch
      %17 = sbr.rel target = $region3
    $region8: #{tpu_custom_call.1} parent=1 // loop_exit
      _
    %482 = vsyncpa [#allocation3], 1
    %s483 = scalar_lea.sflag [#allocation3], 1
    %484 = vsyncpa %s483, 1
    %485 = vsyncpa [#allocation6], 1
    %486 = vsyncpa [#allocation4], 1
    %s487 = scalar_lea.sflag [#allocation4], 1
    %488 = vsyncpa %s487, 1

// kernel: tpu_custom_call.1
$region0: #{tpu_custom_call.1}
  #allocation0 [shape = 'u32[]', space=smem, size = 0x4, offset = 0x4, fixed_abs, tag = 'smem constant byte address 0x4 - core index']
  #allocation1 [shape = 'u32[144,128]{1,0:T(1,128)}', space=vmem, size = 0x12000, scoped, tag = 'internal scratch']
  %s0 = inlined_call_operand.hbm [shape: f32[16,32], index: 0, kind: input, shape index: {}]
  %s1 = inlined_call_operand.hbm [shape: f32[32,64], index: 1, kind: input, shape index: {}]
  %s2 = inlined_call_operand.vmem [shape: f32[1,64], index: 2, kind: input, shape index: {}]
  %s3 = inlined_call_operand.hbm [shape: f32[64,128], index: 3, kind: input, shape index: {}]
  %s4 = inlined_call_operand.vmem [shape: f32[1,128], index: 4, kind: input, shape index: {}]
  %s5 = inlined_call_operand.hbm [shape: f32[16,128], index: 5, kind: output, shape index: {}]
  %s6 = sld [smem:[#allocation0]]
  $region65: #{tpu_custom_call.1} parent=0
    _
  %s8 = ssub.s32 1, %s6
  %s9 = scalar_select 0, %s8, %s6
  $region1: #{tpu_custom_call.1} parent=0
    #allocation2 [shape = 'u8[8192]{0}', space=vmem, size = 0x2000, scoped, tag = 'input window, operand 0']
    #allocation3 [shape = 's32[2]{0}', space=sflag, size = 0x8, scoped, tag = 'scoped memory for tpu_custom_call.1']
    #allocation4 [shape = 's32[2]{0}', space=sflag, size = 0x8, scoped, tag = 'scoped memory for tpu_custom_call.1']
    #allocation5 [shape = 'u8[16384]{0}', space=vmem, size = 0x4000, scoped, tag = 'input window, operand 1, single buffered']
    #allocation6 [shape = 's32[1]{0}', space=sflag, size = 0x4, scoped, tag = 'scoped memory for tpu_custom_call.1']
    #allocation7 [shape = 'u8[32768]{0}', space=vmem, size = 0x8000, scoped, tag = 'input window, operand 3, single buffered']
    #allocation8 [shape = 'u8[8192]{0}', space=vmem, size = 0x2000, scoped, tag = 'output window, operand 0']
    %10 = vsyncpa [#allocation3], 0
    %s11 = scalar_lea.sflag [#allocation3], 1
    %12 = vsyncpa %s11, 0
    %13 = vsyncpa [#allocation6], 0
    %14 = vsyncpa [#allocation4], 0
    %s15 = scalar_lea.sflag [#allocation4], 1
    %16 = vsyncpa %s15, 0
    loop: start=0, step=1, limit=4
    $region2: #{tpu_custom_call.1} parent=1 // loop_pre_header
      _
    $region3: #{tpu_custom_call.1} parent=1 // loop_header
      %s18 = sphi 0, %s22
      %p19 = scmp.ge.s32.totalorder %s18, 4
      %s28 = sphi 0, %s30
      %s31 = sphi 0, %s28
      %s32 = sphi 0, %s31
      %s48 = sphi 0, %s32
      %s52 = sphi 0, %s52
      %s54 = sphi 0, %s52
      %s55 = sphi 0, %s54
      %s69 = sphi 0, %s55
      %s73 = sphi 0, %s73
      %s75 = sphi 0, %s73
      %s76 = sphi 0, %s75
      %s90 = sphi 0, %s76
      %s94 = sphi 0, %s94
      %s96 = sphi 0, %s94
      %s97 = sphi 0, %s96
      %s111 = sphi 0, %s97
      %s115 = sphi 0, %s115
      %s117 = sphi 0, %s115
      %s118 = sphi 0, %s117
      %s132 = sphi 0, %s118
      %s138 = sphi 0, %s140
      %s141 = sphi 0, %s138
      %s142 = sphi 0, %s141
      %s158 = sphi 0, %s142
    $region4: #{tpu_custom_call.1} parent=1 // loop_header_branch
      %21 = sbr.rel (%p19) target = $region8
    $region5: #{tpu_custom_call.1} parent=1 // loop_body
      %s23 = ssub.s32 %s18, 1
      %s24 = ssub.s32 %s18, 2
      %s25 = sadd.s32 %s18, 1
      %s26 = ssub.s32 %s18, %s25
      %p27 = scmp.eq.s32.totalorder %s26, 0
      %s29 = sadd.s32 %s28, 1
      %s30 = scalar_select %p27, %s28, %s29
      %p33 = pneg %p27
      %p34 = scmp.eq.s32.totalorder %s18, 1
      %p35 = por %p33, %p34
      %p36 = scmp.ne.s32.totalorder %s28, %s31
      %p37 = scmp.eq.s32.totalorder %s18, 0
      %p38 = por %p36, %p37
      %p39 = scmp.ne.s32.totalorder %s28, %s31
      %p40 = scmp.eq.s32.totalorder %s23, 1
      %p41 = por %p39, %p40
      %p42 = scmp.ne.s32.totalorder %s31, %s32
      %p43 = scmp.eq.s32.totalorder %s23, 0
      %p44 = por %p42, %p43
      %p45 = scmp.ne.s32.totalorder %s31, %s32
      %p46 = scmp.eq.s32.totalorder %s24, 1
      %p47 = por %p45, %p46
      %p49 = scmp.ne.s32.totalorder %s32, %s48
      %p50 = scmp.eq.s32.totalorder %s24, 0
      %p51 = por %p49, %p50
      %s53 = sadd.s32 %s52, 1
      %p56 = scmp.eq.s32.totalorder %s18, 1
      %p57 = scmp.ne.s32.totalorder %s52, %s54
      %p58 = scmp.eq.s32.totalorder %s18, 0
      %p59 = por %p57, %p58
      %p60 = scmp.ne.s32.totalorder %s52, %s54
      %p61 = scmp.eq.s32.totalorder %s23, 1
      %p62 = por %p60, %p61
      %p63 = scmp.ne.s32.totalorder %s54, %s55
      %p64 = scmp.eq.s32.totalorder %s23, 0
      %p65 = por %p63, %p64
      %p66 = scmp.ne.s32.totalorder %s54, %s55
      %p67 = scmp.eq.s32.totalorder %s24, 1
      %p68 = por %p66, %p67
      %p70 = scmp.ne.s32.totalorder %s55, %s69
      %p71 = scmp.eq.s32.totalorder %s24, 0
      %p72 = por %p70, %p71
      %s74 = sadd.s32 %s73, 1
      %p77 = scmp.eq.s32.totalorder %s18, 1
      %p78 = scmp.ne.s32.totalorder %s73, %s75
      %p79 = scmp.eq.s32.totalorder %s18, 0
      %p80 = por %p78, %p79
      %p81 = scmp.ne.s32.totalorder %s73, %s75
      %p82 = scmp.eq.s32.totalorder %s23, 1
      %p83 = por %p81, %p82
      %p84 = scmp.ne.s32.totalorder %s75, %s76
      %p85 = scmp.eq.s32.totalorder %s23, 0
      %p86 = por %p84, %p85
      %p87 = scmp.ne.s32.totalorder %s75, %s76
      %p88 = scmp.eq.s32.totalorder %s24, 1
      %p89 = por %p87, %p88
      %p91 = scmp.ne.s32.totalorder %s76, %s90
      %p92 = scmp.eq.s32.totalorder %s24, 0
      %p93 = por %p91, %p92
      %s95 = sadd.s32 %s94, 1
      %p98 = scmp.eq.s32.totalorder %s18, 1
      %p99 = scmp.ne.s32.totalorder %s94, %s96
      %p100 = scmp.eq.s32.totalorder %s18, 0
      %p101 = por %p99, %p100
      %p102 = scmp.ne.s32.totalorder %s94, %s96
      %p103 = scmp.eq.s32.totalorder %s23, 1
      %p104 = por %p102, %p103
      %p105 = scmp.ne.s32.totalorder %s96, %s97
      %p106 = scmp.eq.s32.totalorder %s23, 0
      %p107 = por %p105, %p106
      %p108 = scmp.ne.s32.totalorder %s96, %s97
      %p109 = scmp.eq.s32.totalorder %s24, 1
      %p110 = por %p108, %p109
      %p112 = scmp.ne.s32.totalorder %s97, %s111
      %p113 = scmp.eq.s32.totalorder %s24, 0
      %p114 = por %p112, %p113
      %s116 = sadd.s32 %s115, 1
      %p119 = scmp.eq.s32.totalorder %s18, 1
      %p120 = scmp.ne.s32.totalorder %s115, %s117
      %p121 = scmp.eq.s32.totalorder %s18, 0
      %p122 = por %p120, %p121
      %p123 = scmp.ne.s32.totalorder %s115, %s117
      %p124 = scmp.eq.s32.totalorder %s23, 1
      %p125 = por %p123, %p124
      %p126 = scmp.ne.s32.totalorder %s117, %s118
      %p127 = scmp.eq.s32.totalorder %s23, 0
      %p128 = por %p126, %p127
      %p129 = scmp.ne.s32.totalorder %s117, %s118
      %p130 = scmp.eq.s32.totalorder %s24, 1
      %p131 = por %p129, %p130
      %p133 = scmp.ne.s32.totalorder %s118, %s132
      %p134 = scmp.eq.s32.totalorder %s24, 0
      %p135 = por %p133, %p134
      %s136 = ssub.s32 %s18, %s25
      %p137 = scmp.eq.s32.totalorder %s136, 0
      %s139 = sadd.s32 %s138, 1
      %s140 = scalar_select %p137, %s138, %s139
      %p143 = pneg %p137
      %p144 = scmp.eq.s32.totalorder %s18, 1
      %p145 = por %p143, %p144
      %p146 = scmp.ne.s32.totalorder %s138, %s141
      %p147 = scmp.eq.s32.totalorder %s18, 0
      %p148 = por %p146, %p147
      %p149 = scmp.ne.s32.totalorder %s138, %s141
      %p150 = scmp.eq.s32.totalorder %s23, 1
      %p151 = por %p149, %p150
      %p152 = scmp.ne.s32.totalorder %s141, %s142
      %p153 = scmp.eq.s32.totalorder %s23, 0
      %p154 = por %p152, %p153
      %p155 = scmp.ne.s32.totalorder %s141, %s142
      %p156 = scmp.eq.s32.totalorder %s24, 1
      %p157 = por %p155, %p156
      %p159 = scmp.ne.s32.totalorder %s142, %s158
      %p160 = scmp.eq.s32.totalorder %s24, 0
      %p161 = por %p159, %p160
      %p162 = scmp.le.s32.totalorder 1, %s18
      %p163 = scmp.lt.s32.totalorder %s18, 3
      %p164 = pnand %p162, %p163
      %p165 = pneg %p164
      // Predicated region
      $region9: #{tpu_custom_call.1} parent=5 // pred_check
        _
      $region10: #{tpu_custom_call.1} parent=5 // pred_check_branch
        %167 = sbr.rel (%p164) target = $region12
      $region11: #{tpu_custom_call.1} parent=5 // pred_region
        %s168 = ssub.s32 %s18, 1
        // Predicated region
        $region13: #{tpu_custom_call.1} parent=11 // pred_check
          %p169 = pneg %p65
        $region14: #{tpu_custom_call.1} parent=11 // pred_check_branch
          %171 = sbr.rel (%p169) target = $region16
        $region15: #{tpu_custom_call.1} parent=11 // pred_region
          %s173 = ssub.s32 512, 512
          %174 = vsyncadd [#allocation6], %s173
          %s175 = sshll.u32 [#allocation5], 4
          %s176 = int_to_ptr.vmem [resolvable:$true] %s175
          %181 = dma.hbm_to_vmem [thread:$0]  %s1, 512, %s176, [#allocation6], 128, 128, 8
        $region16: #{tpu_custom_call.1} parent=11 // pred_fallthru
          _
        // Predicated region
        $region17: #{tpu_custom_call.1} parent=11 // pred_check
          %p182 = pneg %p86
        $region18: #{tpu_custom_call.1} parent=11 // pred_check_branch
          %184 = sbr.rel (%p182) target = $region20
        $region19: #{tpu_custom_call.1} parent=11 // pred_region
          _
        $region20: #{tpu_custom_call.1} parent=11 // pred_fallthru
          _
        // Predicated region
        $region21: #{tpu_custom_call.1} parent=11 // pred_check
          %p185 = pneg %p107
        $region22: #{tpu_custom_call.1} parent=11 // pred_check_branch
          %187 = sbr.rel (%p185) target = $region24
        $region23: #{tpu_custom_call.1} parent=11 // pred_region
          %s189 = ssub.s32 1024, 1024
          %190 = vsyncadd [#allocation6], %s189
          %s191 = sshll.u32 [#allocation7], 4
          %s192 = int_to_ptr.vmem [resolvable:$true] %s191
          %197 = dma.hbm_to_vmem [thread:$0]  %s3, 1024, %s192, [#allocation6], 128, 128, 8
        $region24: #{tpu_custom_call.1} parent=11 // pred_fallthru
          _
        // Predicated region
        $region25: #{tpu_custom_call.1} parent=11 // pred_check
          %p198 = pneg %p128
        $region26: #{tpu_custom_call.1} parent=11 // pred_check_branch
          %200 = sbr.rel (%p198) target = $region28
        $region27: #{tpu_custom_call.1} parent=11 // pred_region
          _
        $region28: #{tpu_custom_call.1} parent=11 // pred_fallthru
          _
      $region12: #{tpu_custom_call.1} parent=5 // pred_fallthru
        _
      %p201 = scmp.lt.s32.totalorder %s18, 2
      // Predicated region
      $region29: #{tpu_custom_call.1} parent=5 // pred_check
        %p202 = pneg %p201
      $region30: #{tpu_custom_call.1} parent=5 // pred_check_branch
        %204 = sbr.rel (%p202) target = $region32
      $region31: #{tpu_custom_call.1} parent=5 // pred_region
        // Predicated region
        $region33: #{tpu_custom_call.1} parent=31 // pred_check
          %p205 = pneg %p38
        $region34: #{tpu_custom_call.1} parent=31 // pred_check_branch
          %207 = sbr.rel (%p205) target = $region36
        $region35: #{tpu_custom_call.1} parent=31 // pred_region
          %s208 = sand.u32 %s28, 1
          %s209 = scalar_lea.sflag [#allocation3], %s208
          %s210 = sand.u32 %s28, 1
          %s211 = smul.addr %s210, 8
          %s212 = scalar_lea.vmem [#allocation2], %s211
          %s214 = ssub.s32 128, 128
          %215 = vsyncadd %s209, %s214
          %s216 = smul.addr %s18, 128
          %s217 = scalar_lea.hbm %s0, %s216
          %s219 = sshll.u32 %s212, 4
          %s220 = int_to_ptr.vmem [resolvable:$true] %s219
          %222 = dma.hbm_to_vmem [thread:$0]  %s217, 128, %s220, %s209
        $region36: #{tpu_custom_call.1} parent=31 // pred_fallthru
          _
      $region32: #{tpu_custom_call.1} parent=5 // pred_fallthru
        _
      %p223 = scmp.le.s32.totalorder 1, %s18
      %p224 = scmp.lt.s32.totalorder %s18, 3
      %p225 = pnand %p223, %p224
      %p226 = pneg %p225
      // Predicated region
      $region37: #{tpu_custom_call.1} parent=5 // pred_check
        _
      $region38: #{tpu_custom_call.1} parent=5 // pred_check_branch
        %228 = sbr.rel (%p225) target = $region40
      $region39: #{tpu_custom_call.1} parent=5 // pred_region
        %s229 = ssub.s32 %s18, 1
        %s230 = sand.u32 %s31, 1
        %s231 = scalar_lea.sflag [#allocation3], %s230
        %s232 = sand.u32 %s31, 1
        %s233 = smul.addr %s232, 8
        %s234 = scalar_lea.vmem [#allocation2], %s233
        // Predicated region
        $region41: #{tpu_custom_call.1} parent=39 // pred_check
          %p235 = pneg %p44
        $region42: #{tpu_custom_call.1} parent=39 // pred_check_branch
          %237 = sbr.rel (%p235) target = $region44
        $region43: #{tpu_custom_call.1} parent=39 // pred_region
          %238 = dma.done %s231, 128
        $region44: #{tpu_custom_call.1} parent=39 // pred_fallthru
          _
        // Predicated region
        $region45: #{tpu_custom_call.1} parent=39 // pred_check
          %p239 = pneg %p65
        $region46: #{tpu_custom_call.1} parent=39 // pred_check_branch
          %241 = sbr.rel (%p239) target = $region48
        $region47: #{tpu_custom_call.1} parent=39 // pred_region
          %242 = dma.done [#allocation6], 512
        $region48: #{tpu_custom_call.1} parent=39 // pred_fallthru
          _
        // Predicated region
        $region49: #{tpu_custom_call.1} parent=39 // pred_check
          %p243 = pneg %p107
        $region50: #{tpu_custom_call.1} parent=39 // pred_check_branch
          %245 = sbr.rel (%p243) target = $region52
        $region51: #{tpu_custom_call.1} parent=39 // pred_region
          %246 = dma.done [#allocation6], 1024
        $region52: #{tpu_custom_call.1} parent=39 // pred_fallthru
          _
        %s247 = sand.u32 %s31, 1
        %s248 = scalar_lea.sflag [#allocation3], %s247
        %s249 = sand.u32 %s31, 1
        %s250 = smul.addr %s249, 8
        %s251 = scalar_lea.vmem [#allocation2], %s250
        %p252 = pneg %p44
        %p253 = pneg %p41
        %p254 = pneg %p65
        %p255 = pneg %p62
        %p256 = pneg %p86
        %p257 = pneg %p83
        %p258 = pneg %p107
        %p259 = pneg %p104
        %p260 = pneg %p128
        %p261 = pneg %p125
        %p262 = pneg %p154
        %p263 = pneg %p151
        %s264 = sand.u32 %s141, 1
        %s265 = scalar_lea.sflag [#allocation4], %s264
        %s266 = sand.u32 %s141, 1
        %s267 = smul.addr %s266, 8
        %s268 = scalar_lea.vmem [#allocation8], %s267
        %v269 = vld [vmem:[%s234] sm:$0xff]
        %v270 = vld [vmem:[#allocation5] sm:$0xff]
        %v271 = vld [vmem:[#allocation5 + $0x8] sm:$0xff]
        %v272 = vld [vmem:[#allocation5 + $0x10] sm:$0xff]
        %v273 = vld [vmem:[#allocation5 + $0x18] sm:$0xff]
        %v274 = vld [vmem:[%s2] sm:$0x1]
        %v276 = vlaneseq
        %v277 = vshrl.u32 %v276, 7
        %v278 = vsub.s32 0, %v277
        %v279 = vrot.slane %v274, %v278
        %vm281 = vcmask 261120
        %v283 = vsel %vm281, %v269, 0
        %285 = vmatprep.subr.mxu0 0.0
        %286 = vmatpush1.msra.mxu0 %v270
        %287 = vmatprep.subr.mxu0 0.0
        %288 = vmatpush1.msra.mxu0 %v271
        %289 = vmatprep.subr.mxu0 0.0
        %290 = vmatpush1.msra.mxu0 %v272
        %291 = vmatprep.subr.mxu0 0.0
        %292 = vmatpush1.msra.mxu0 %v273
        %293 = vmatprep.subr.mxu0 0.0
        %294 = vmatpush1.msra.mxu0 0.0
        %295 = vmatprep.subr.mxu0 0.0
        %296 = vmatpush1.msra.mxu0 0.0
        %297 = vmatprep.subr.mxu0 0.0
        %298 = vmatpush1.msra.mxu0 0.0
        %299 = vmatprep.subr.mxu0 0.0
        %300 = vmatpush1.msra.mxu0 0.0
        %301 = vmatprep.subr.mxu0 0.0
        %302 = vmatpush1.msra.mxu0 0.0
        %303 = vmatprep.subr.mxu0 0.0
        %304 = vmatpush1.msra.mxu0 0.0
        %305 = vmatprep.subr.mxu0 0.0
        %306 = vmatpush1.msra.mxu0 0.0
        %307 = vmatprep.subr.mxu0 0.0
        %308 = vmatpush1.msra.mxu0 0.0
        %309 = vmatprep.subr.mxu0 0.0
        %310 = vmatpush1.msra.mxu0 0.0
        %311 = vmatprep.subr.mxu0 0.0
        %312 = vmatpush1.msra.mxu0 0.0
        %313 = vmatprep.subr.mxu0 0.0
        %314 = vmatpush1.msra.mxu0 0.0
        %315 = vmatprep.subr.mxu0 0.0
        %316 = vmatpush1.msra.mxu0 0.0
        %317 = vmatprep.subr.mxu0 0.0
        %318 = vmatpush1.msra.mxu0 0.0
        %319 = vmatprep.subr.mxu0 0.0
        %320 = vmatpush1.msra.mxu0 0.0
        %321 = vmatprep.subr.mxu0 0.0
        %322 = vmatpush1.msra.mxu0 0.0
        %323 = vmatprep.subr.mxu0 0.0
        %324 = vmatpush1.msra.mxu0 0.0
        %325 = vmatprep.subr.mxu0 0.0
        %326 = vmatpush1.msra.mxu0 0.0
        %327 = vmatprep.subr.mxu0 0.0
        %328 = vmatpush1.msra.mxu0 0.0
        %329 = vmatprep.subr.mxu0 0.0
        %330 = vmatpush1.msra.mxu0 0.0
        %331 = vmatprep.subr.mxu0 0.0
        %332 = vmatpush1.msra.mxu0 0.0
        %333 = vmatprep.subr.mxu0 0.0
        %334 = vmatpush1.msra.mxu0 0.0
        %335 = vmatprep.subr.mxu0 0.0
        %336 = vmatpush1.msra.mxu0 0.0
        %337 = vmatprep.subr.mxu0 0.0
        %338 = vmatpush1.msra.mxu0 0.0
        %339 = vmatprep.subr.mxu0 0.0
        %340 = vmatpush1.msra.mxu0 0.0
        %341 = vmatprep.subr.mxu0 0.0
        %342 = vmatpush1.msra.mxu0 0.0
        %343 = vmatprep.subr.mxu0 0.0
        %344 = vmatpush1.msra.mxu0 0.0
        %345 = vmatprep.subr.mxu0 0.0
        %346 = vmatpush1.msra.mxu0 0.0
        %347 = vmatprep.subr.mxu0 0.0
        %348 = vmatpush1.msra.mxu0 0.0
        %349 = vmatprep.mubr.f32.mxu0 0.0
        %350 = vmatmul.mubr.f32.gmra.mrb[0].mxu0 %v283
        %v351 = vpop.f32.mrb[0].mxu0
        %v352 = vadd.f32 %v279, %v351
        %v353 = vpop.f32.mrb[0].mxu0
        %354 = vdwg.mxu0
        %v355 = vmul.f32 %v352, 0.5
        %v356 = vmul.f32 %v352, 0.70710677
        %v357 = verf.f32.pop %v356
        %v358 = vadd.f32 %v357, 1.0
        %v359 = vmul.f32 %v355, %v358
        %v360 = vld [vmem:[#allocation7] sm:$0xff]
        %v361 = vld [vmem:[#allocation7 + $0x8] sm:$0xff]
        %v362 = vld [vmem:[#allocation7 + $0x10] sm:$0xff]
        %v363 = vld [vmem:[#allocation7 + $0x18] sm:$0xff]
        %v364 = vld [vmem:[#allocation7 + $0x20] sm:$0xff]
        %v365 = vld [vmem:[#allocation7 + $0x28] sm:$0xff]
        %v366 = vld [vmem:[#allocation7 + $0x30] sm:$0xff]
        %v367 = vld [vmem:[#allocation7 + $0x38] sm:$0xff]
        %v368 = vld [vmem:[%s4] sm:$0x1]
        %v370 = vlaneseq
        %v371 = vshrl.u32 %v370, 7
        %v372 = vsub.s32 0, %v371
        %v373 = vrot.slane %v368, %v372
        %vm375 = vcmask 523264
        %v377 = vsel %vm375, %v359, 0
        %379 = vmatprep.subr.mxu0 0.0
        %380 = vmatpush1.msra.mxu0 %v360
        %381 = vmatprep.subr.mxu0 0.0
        %382 = vmatpush1.msra.mxu0 %v361
        %383 = vmatprep.subr.mxu0 0.0
        %384 = vmatpush1.msra.mxu0 %v362
        %385 = vmatprep.subr.mxu0 0.0
        %386 = vmatpush1.msra.mxu0 %v363
        %387 = vmatprep.subr.mxu0 0.0
        %388 = vmatpush1.msra.mxu0 %v364
        %389 = vmatprep.subr.mxu0 0.0
        %390 = vmatpush1.msra.mxu0 %v365
        %391 = vmatprep.subr.mxu0 0.0
        %392 = vmatpush1.msra.mxu0 %v366
        %393 = vmatprep.subr.mxu0 0.0
        %394 = vmatpush1.msra.mxu0 %v367
        %395 = vmatprep.subr.mxu0 0.0
        %396 = vmatpush1.msra.mxu0 0.0
        %397 = vmatprep.subr.mxu0 0.0
        %398 = vmatpush1.msra.mxu0 0.0
        %399 = vmatprep.subr.mxu0 0.0
        %400 = vmatpush1.msra.mxu0 0.0
        %401 = vmatprep.subr.mxu0 0.0
        %402 = vmatpush1.msra.mxu0 0.0
        %403 = vmatprep.subr.mxu0 0.0
        %404 = vmatpush1.msra.mxu0 0.0
        %405 = vmatprep.subr.mxu0 0.0
        %406 = vmatpush1.msra.mxu0 0.0
        %407 = vmatprep.subr.mxu0 0.0
        %408 = vmatpush1.msra.mxu0 0.0
        %409 = vmatprep.subr.mxu0 0.0
        %410 = vmatpush1.msra.mxu0 0.0
        %411 = vmatprep.subr.mxu0 0.0
        %412 = vmatpush1.msra.mxu0 0.0
        %413 = vmatprep.subr.mxu0 0.0
        %414 = vmatpush1.msra.mxu0 0.0
        %415 = vmatprep.subr.mxu0 0.0
        %416 = vmatpush1.msra.mxu0 0.0
        %417 = vmatprep.subr.mxu0 0.0
        %418 = vmatpush1.msra.mxu0 0.0
        %419 = vmatprep.subr.mxu0 0.0
        %420 = vmatpush1.msra.mxu0 0.0
        %421 = vmatprep.subr.mxu0 0.0
        %422 = vmatpush1.msra.mxu0 0.0
        %423 = vmatprep.subr.mxu0 0.0
        %424 = vmatpush1.msra.mxu0 0.0
        %425 = vmatprep.subr.mxu0 0.0
        %426 = vmatpush1.msra.mxu0 0.0
        %427 = vmatprep.subr.mxu0 0.0
        %428 = vmatpush1.msra.mxu0 0.0
        %429 = vmatprep.subr.mxu0 0.0
        %430 = vmatpush1.msra.mxu0 0.0
        %431 = vmatprep.subr.mxu0 0.0
        %432 = vmatpush1.msra.mxu0 0.0
        %433 = vmatprep.subr.mxu0 0.0
        %434 = vmatpush1.msra.mxu0 0.0
        %435 = vmatprep.subr.mxu0 0.0
        %436 = vmatpush1.msra.mxu0 0.0
        %437 = vmatprep.subr.mxu0 0.0
        %438 = vmatpush1.msra.mxu0 0.0
        %439 = vmatprep.subr.mxu0 0.0
        %440 = vmatpush1.msra.mxu0 0.0
        %441 = vmatprep.subr.mxu0 0.0
        %442 = vmatpush1.msra.mxu0 0.0
        %443 = vmatprep.mubr.f32.mxu0 0.0
        %444 = vmatmul.mubr.f32.gmra.mrb[0].mxu0 %v377
        %v445 = vpop.f32.mrb[0].mxu0
        %v446 = vadd.f32 %v373, %v445
        %v447 = vpop.f32.mrb[0].mxu0
        %448 = vdwg.mxu0
        %449 = vst [vmem:[%s268] sm:$0xff] %v446
        %s450 = sand.u32 %s141, 1
        %s451 = scalar_lea.sflag [#allocation4], %s450
        %s452 = sand.u32 %s141, 1
        %s453 = smul.addr %s452, 8
        %s454 = scalar_lea.vmem [#allocation8], %s453
        // Predicated region
        $region53: #{tpu_custom_call.1} parent=39 // pred_check
          %p455 = pneg %p151
        $region54: #{tpu_custom_call.1} parent=39 // pred_check_branch
          %457 = sbr.rel (%p455) target = $region56
        $region55: #{tpu_custom_call.1} parent=39 // pred_region
          %s459 = ssub.s32 128, 128
          %460 = vsyncadd %s451, %s459
          %s461 = smul.addr %s23, 128
          %s462 = scalar_lea.hbm %s5, %s461
          %s464 = sshll.u32 %s454, 4
          %s465 = int_to_ptr.vmem [resolvable:$true] %s464
          %467 = dma.vmem_to_hbm [thread:$0]  %s465, 128, %s462, %s451
        $region56: #{tpu_custom_call.1} parent=39 // pred_fallthru
          _
      $region40: #{tpu_custom_call.1} parent=5 // pred_fallthru
        _
      %p468 = scmp.le.s32.totalorder 2, %s18
      // Predicated region
      $region57: #{tpu_custom_call.1} parent=5 // pred_check
        %p469 = pneg %p468
      $region58: #{tpu_custom_call.1} parent=5 // pred_check_branch
        %471 = sbr.rel (%p469) target = $region60
      $region59: #{tpu_custom_call.1} parent=5 // pred_region
        %s472 = ssub.s32 %s18, 2
        // Predicated region
        $region61: #{tpu_custom_call.1} parent=59 // pred_check
          %p473 = pneg %p157
        $region62: #{tpu_custom_call.1} parent=59 // pred_check_branch
          %475 = sbr.rel (%p473) target = $region64
        $region63: #{tpu_custom_call.1} parent=59 // pred_region
          %s476 = sand.u32 %s142, 1
          %s477 = scalar_lea.sflag [#allocation4], %s476
          %s478 = sand.u32 %s142, 1
          %s479 = smul.addr %s478, 8
          %s480 = scalar_lea.vmem [#allocation8], %s479
          %481 = dma.done %s477, 128
        $region64: #{tpu_custom_call.1} parent=59 // pred_fallthru
          _
      $region60: #{tpu_custom_call.1} parent=5 // pred_fallthru
        _
    $region6: #{tpu_custom_call.1} parent=1 // loop_footer
      %s22 = sadd.s32 1, %s18
    $region7: #{tpu_custom_call.1} parent=1 // loop_footer_branch
      %17 = sbr.rel target = $region3
    $region8: #{tpu_custom_call.1} parent=1 // loop_exit
      _
    %482 = vsyncpa [#allocation3], 1
    %s483 = scalar_lea.sflag [#allocation3], 1
    %484 = vsyncpa %s483, 1
    %485 = vsyncpa [#allocation6], 1
    %486 = vsyncpa [#allocation4], 1
    %s487 = scalar_lea.sflag [#allocation4], 1
    %488 = vsyncpa %s487, 1

</llo_original>
